<compile_context>
chip_gen: v7x
topology: tpu7x:2x2x1
jax: 0.10.0
libtpu: 0.0.40
codegen_flags: <defaults>
</compile_context>

<pallas_src>
import functools
from typing import NamedTuple

import jax
import jax.numpy as jnp
from jax.experimental import pallas as pl
from jax.experimental.pallas import tpu as pltpu


def _round_up(x, m):
    return ((x + m - 1) // m) * m


# ---------------------------------------------------------------------------
# Kernel
# ---------------------------------------------------------------------------
def _mlp_kernel(x_ref, w1_ref, b1_ref, w2_ref, b2_ref, o_ref, acc_ref, *, num_o):
    """One (batch tile, hidden tile) grid step of the fused MLP.

    grid = (batch tiles, hidden tiles). The hidden axis is the reduction axis
    of the second matmul, so partial results accumulate in f32 VMEM scratch
    and the output is written only on the last hidden step.
    """
    h_idx = pl.program_id(1)

    @pl.when(h_idx == 0)
    def _init():
        acc_ref[...] = jnp.zeros_like(acc_ref)

    x = x_ref[...]
    if x.dtype != w1_ref.dtype:
        # In-kernel cast (VPU slot, hidden under the MXU) instead of a
        # wrapper-side XLA cast pass that re-reads/re-writes x in HBM.
        x = x.astype(w1_ref.dtype)

    # Linear1 (full num_i reduction per hidden tile) + bias + ReLU.
    h = jnp.dot(x, w1_ref[...], preferred_element_type=jnp.float32)
    h = jnp.maximum(h + b1_ref[...], 0.0)
    # Linear2 partial product for this hidden tile, accumulated in f32.
    acc_ref[...] += jnp.dot(h.astype(w2_ref.dtype), w2_ref[...],
                            preferred_element_type=jnp.float32)

    @pl.when(h_idx == pl.num_programs(1) - 1)
    def _finalize():
        y = jax.nn.sigmoid(acc_ref[...] + b2_ref[...])
        # Store only the real output columns (tiny num_o -> tiny HBM writeback,
        # masked vst accepted) in the caller's dtype.
        o_ref[...] = y[:, :num_o].astype(o_ref.dtype)


# ---------------------------------------------------------------------------
# Parameter packing (one-time)
# ---------------------------------------------------------------------------
class MLPParams(NamedTuple):
    w1: jax.Array   # (num_i, num_h_p), compute dtype
    b1: jax.Array   # (1, num_h_p), f32
    w2: jax.Array   # (num_h_p, num_o_p), compute dtype
    b2: jax.Array   # (1, num_o_p), f32
    num_o: int      # real output width


def prepare_params(w1, b1, w2, b2, *, compute_dtype=None):
    """One-time packing of the weights (call once, reuse every forward):
    pad hidden/output widths to lane multiples with zeros (exact results) and
    cast the matmul operands to the MXU compute dtype (bf16 recommended on
    v7x / for large layers)."""
    num_i, num_h = w1.shape
    num_o = w2.shape[1]
    if compute_dtype is None:
        compute_dtype = w1.dtype
    compute_dtype = jnp.dtype(compute_dtype)
    num_h_p = _round_up(num_h, 128)
    num_o_p = _round_up(num_o, 128)
    w1p = jnp.zeros((num_i, num_h_p), compute_dtype).at[:, :num_h].set(
        w1.astype(compute_dtype))
    b1p = jnp.zeros((1, num_h_p), jnp.float32).at[:, :num_h].set(
        b1.reshape(1, num_h).astype(jnp.float32))
    w2p = jnp.zeros((num_h_p, num_o_p), compute_dtype).at[:num_h, :num_o].set(
        w2.astype(compute_dtype))
    b2p = jnp.zeros((1, num_o_p), jnp.float32).at[:, :num_o].set(
        b2.reshape(1, num_o).astype(jnp.float32))
    return MLPParams(w1p, b1p, w2p, b2p, int(num_o))


# ---------------------------------------------------------------------------
# Generation-aware tiling plan
# ---------------------------------------------------------------------------
def _tpu_vmem_and_cores():
    capacity = 64 << 20                       # conservative default (v7x per-TC)
    try:
        info = pltpu.get_tpu_info()
        cap = getattr(info, "vmem_capacity_bytes", None)
        if cap:
            capacity = int(cap)
    except Exception:
        pass
    # 128 MiB parts (v5e/v6e) have one TensorCore per chip; 64 MiB parts (v7x)
    # have two and want >=2 batch tiles so both cores get work.
    num_cores = 1 if capacity > (64 << 20) else 2
    return capacity, num_cores


def _tile_h_candidates(num_h_p):
    n = max(num_h_p // 128, 1)
    cands = sorted({d * 128 for d in range(1, n + 1) if n % d == 0}, reverse=True)
    if num_h_p not in cands:
        cands.insert(0, num_h_p)
    return cands


def _plan_tiles(B, num_i, num_h_p, num_o, num_o_p,
                x_item, w_item, o_item, budget_bytes, num_cores, sub):
    """Pick (block_b, tile_h): the largest hidden tile whose working set fits
    the per-generation VMEM budget, then the largest batch tile; force >=2
    batch tiles only when there are 2 TensorCores to feed."""
    B_pad = _round_up(B, sub)
    for tile_h in _tile_h_candidates(num_h_p):
        n_h = num_h_p // tile_h
        w_bufs = 1 if n_h == 1 else 2           # constant index -> single buffer
        resident = w_bufs * (num_i * tile_h + tile_h * num_o_p) * w_item
        resident += w_bufs * tile_h * 4 + num_o_p * 4            # f32 biases
        per_row = 2 * num_i * x_item            # streamed x tile (double buffer)
        per_row += 2 * num_o * o_item           # streamed out tile (double buffer)
        per_row += num_o_p * 4                  # f32 accumulator scratch
        per_row += tile_h * (4 + w_item)        # f32 h intermediate + cast copy
        per_row += num_i * w_item               # in-kernel x cast copy
        avail = budget_bytes - resident
        if avail < per_row * sub:
            continue
        block_b = min(avail // per_row, 4096, B_pad)
        if num_cores >= 2 and B_pad >= 2 * sub:
            # Feed both v7x TensorCores / overlap the x-load & out-store DMAs.
            block_b = min(block_b, pl.cdiv(B_pad, num_cores))
        block_b = max(sub, (block_b // sub) * sub)
        if block_b >= B:
            block_b = B                         # single, exact full-batch tile
        else:
            # Even split -> no (or minimal) masked partial last tile.
            n_b = pl.cdiv(B_pad, block_b)
            block_b = _round_up(pl.cdiv(B_pad, n_b), sub)
        return int(block_b), int(tile_h)
    # Smallest hidden tile, minimal batch tile (pathological widths).
    # TODO(synk): also tile num_i (K of the first matmul, needs a second f32
    # accumulator for h before the ReLU) for inputs so wide that a single
    # (num_i x 128) weight tile already overflows VMEM.
    return int(sub), int(_tile_h_candidates(num_h_p)[-1])


# ---------------------------------------------------------------------------
# Forward wrapper
# ---------------------------------------------------------------------------
@functools.partial(
    jax.jit,
    static_argnames=("num_o", "out_dtype", "block_b", "tile_h", "vmem_limit"))
def _mlp_forward_impl(x, w1, b1, w2, b2, *, num_o, out_dtype, block_b, tile_h,
                      vmem_limit):
    B, num_i = x.shape
    num_h_p = w1.shape[1]
    num_o_p = w2.shape[1]
    n_b = pl.cdiv(B, block_b)
    n_h = num_h_p // tile_h
    single_h = n_h == 1

    def _weight_spec(shape, index_map):
        # Constant index across the whole grid -> single-buffered residency.
        if single_h:
            return pl.BlockSpec(shape, index_map, pipeline_mode=pl.Buffered(1))
        return pl.BlockSpec(shape, index_map)

    kernel = functools.partial(_mlp_kernel, num_o=num_o)

    return pl.pallas_call(
        kernel,
        out_shape=jax.ShapeDtypeStruct((B, num_o), out_dtype),
        grid_spec=pltpu.PrefetchScalarGridSpec(
            num_scalar_prefetch=0,
            grid=(n_b, n_h),
            in_specs=[
                # Streamed batch tile; constant across the hidden axis so it is
                # fetched once per batch tile.
                pl.BlockSpec((block_b, num_i), lambda b, h: (b, 0)),
                # Weight / bias tiles along the hidden axis.
                _weight_spec((num_i, tile_h), lambda b, h: (0, h)),
                _weight_spec((1, tile_h), lambda b, h: (0, h)),
                _weight_spec((tile_h, num_o_p), lambda b, h: (h, 0)),
                pl.BlockSpec((1, num_o_p), lambda b, h: (0, 0),
                             pipeline_mode=pl.Buffered(1)),
            ],
            out_specs=pl.BlockSpec((block_b, num_o), lambda b, h: (b, 0)),
            scratch_shapes=[pltpu.VMEM((block_b, num_o_p), jnp.float32)],
        ),
        compiler_params=pltpu.CompilerParams(
            dimension_semantics=("parallel", "arbitrary"),
            vmem_limit_bytes=int(vmem_limit),
        ),
    )(x, w1, b1, w2, b2)


def mlp_forward(x, params, *, block_b=None, tile_h=None, out_dtype=None):
    """Fused MLP forward. `params` must come from prepare_params (weights are
    padded/cast exactly once, not per call)."""
    w1, b1, w2, b2, num_o = params
    B, num_i = x.shape
    assert w1.shape[0] == num_i, (x.shape, w1.shape)
    num_h_p = w1.shape[1]
    num_o_p = w2.shape[1]

    out_dtype = jnp.dtype(out_dtype) if out_dtype is not None else jnp.dtype(x.dtype)
    x_item = jnp.dtype(x.dtype).itemsize
    w_item = jnp.dtype(w1.dtype).itemsize
    o_item = out_dtype.itemsize

    capacity, num_cores = _tpu_vmem_and_cores()
    # Generation-aware VMEM targets: ~100 MiB on 128 MiB parts (v5e/v6e),
    # ~52 MiB on 64 MiB parts (v7x).
    vmem_limit = int(max(min(capacity - (12 << 20), 100 << 20), 32 << 20))
    budget = vmem_limit - (8 << 20)

    sub = 16 if min(x_item, o_item) < 4 else 8   # sublane packing granularity
    auto_block_b, auto_tile_h = _plan_tiles(
        B, num_i, num_h_p, num_o, num_o_p, x_item, w_item, o_item,
        budget, num_cores, sub)
    if block_b is None:
        block_b = auto_block_b
    if tile_h is None:
        tile_h = auto_tile_h
    if num_h_p % tile_h != 0:
        raise ValueError(f"tile_h={tile_h} must divide padded hidden {num_h_p}")

    return _mlp_forward_impl(
        x, w1, b1, w2, b2, num_o=int(num_o), out_dtype=out_dtype,
        block_b=int(block_b), tile_h=int(tile_h), vmem_limit=vmem_limit)


# ---------------------------------------------------------------------------
# Reference & init
# ---------------------------------------------------------------------------
def init_mlp_params(key, num_i, num_h, num_o=1, dtype=jnp.float32):
    """torch.nn.Linear-style init (uniform +/- 1/sqrt(fan_in)); weights stored
    transposed vs. PyTorch so the kernel computes plain x @ w."""
    k1, k2, k3, k4 = jax.random.split(key, 4)
    bound1 = 1.0 / (num_i ** 0.5)
    bound2 = 1.0 / (num_h ** 0.5)
    w1 = jax.random.uniform(k1, (num_i, num_h), dtype, -bound1, bound1)
    b1 = jax.random.uniform(k2, (1, num_h), dtype, -bound1, bound1)
    w2 = jax.random.uniform(k3, (num_h, num_o), dtype, -bound2, bound2)
    b2 = jax.random.uniform(k4, (1, num_o), dtype, -bound2, bound2)
    return w1, b1, w2, b2


def mlp_reference(x, w1, b1, w2, b2):
    h = jnp.maximum(x @ w1 + b1, 0.0)
    return jax.nn.sigmoid(h @ w2 + b2)


if __name__ == "__main__":
    key = jax.random.PRNGKey(0)
    kx, kp, kx2, kp2 = jax.random.split(key, 4)

    # Shapes implied by the PyTorch module: MLP(num_i=32, num_h=64, num_o=1).
    num_i, num_h, num_o = 32, 64, 1
    w1, b1, w2, b2 = init_mlp_params(kp, num_i, num_h, num_o)
    params = prepare_params(w1, b1, w2, b2)          # f32 weights, padded once

    # Small batch (typical usage of the torch module).
    x = jax.random.normal(kx, (8, num_i), jnp.float32)
    out = mlp_forward(x, params)
    jax.block_until_ready(out)
    ref = mlp_reference(x, w1, b1, w2, b2)
    assert out.shape == (8, num_o), out.shape
    assert jnp.allclose(out, ref, atol=1e-5, rtol=1e-5), "small-batch mismatch"

    # Larger batch: exercises the tiled / pipelined batch grid.
    x_big = jax.random.normal(kx2, (64, num_i), jnp.float32)
    out_big = mlp_forward(x_big, params)
    jax.block_until_ready(out_big)
    ref_big = mlp_reference(x_big, w1, b1, w2, b2)
    assert out_big.shape == (64, num_o), out_big.shape
    assert jnp.allclose(out_big, ref_big, atol=1e-5, rtol=1e-5), "big-batch mismatch"

    # bf16 weights (in-kernel x cast) + forced hidden-axis reduction tiling:
    # exercises the f32-accumulator / pl.when init-finalize path used for
    # layer widths whose weights do not fit resident in v7x's 64 MiB VMEM.
    w1b, b1b, w2b, b2b = init_mlp_params(kp2, num_i, 256, num_o)
    params_bf16 = prepare_params(w1b, b1b, w2b, b2b, compute_dtype=jnp.bfloat16)
    out_h = mlp_forward(x_big, params_bf16, block_b=32, tile_h=128)
    jax.block_until_ready(out_h)
    ref_h = mlp_reference(x_big, w1b, b1b, w2b, b2b)
    assert out_h.shape == (64, num_o), out_h.shape
    assert jnp.allclose(out_h, ref_h, atol=5e-2, rtol=5e-2), "bf16/tiled mismatch"

    print("KERNEL_OK")
</pallas_src>

<mosaic_0001>
module attributes {stable_mosaic.version = 11 : i64} {
  func.func @_mlp_kernel(%arg0: i32, %arg1: i32, %arg2: memref<8x32xf32, #tpu.memory_space<vmem>>, %arg3: memref<32x128xf32, #tpu.memory_space<vmem>>, %arg4: memref<1x128xf32, #tpu.memory_space<vmem>>, %arg5: memref<128x128xf32, #tpu.memory_space<vmem>>, %arg6: memref<1x128xf32, #tpu.memory_space<vmem>>, %arg7: memref<8x1xf32, #tpu.memory_space<vmem>>, %arg8: memref<8x128xf32, #tpu.memory_space<vmem>>) attributes {dimension_semantics = [#tpu.dimension_semantics<parallel>, #tpu.dimension_semantics<arbitrary>], iteration_bounds = array<i64: 1, 1>, scalar_prefetch = 0 : i64, scratch_operands = 1 : i64, tpu.core_type = #tpu.core_type<tc>, window_params = [{transform_indices = @transform_0, window_bounds = array<i64: 8, 32>}, {pipeline_mode = #tpu.pipeline_mode<synchronous>, transform_indices = @transform_1, window_bounds = array<i64: 32, 128>}, {pipeline_mode = #tpu.pipeline_mode<synchronous>, transform_indices = @transform_2, window_bounds = array<i64: 1, 128>}, {pipeline_mode = #tpu.pipeline_mode<synchronous>, transform_indices = @transform_3, window_bounds = array<i64: 128, 128>}, {pipeline_mode = #tpu.pipeline_mode<synchronous>, transform_indices = @transform_4, window_bounds = array<i64: 1, 128>}, {transform_indices = @transform_5, window_bounds = array<i64: 8, 1>}]} {
    %c0_i32 = arith.constant 0 : i32
    %0 = arith.cmpi eq, %arg1, %c0_i32 : i32
    %1 = arith.extui %0 : i1 to i32
    %c0_i32_0 = arith.constant 0 : i32
    %2 = arith.cmpi ne, %1, %c0_i32_0 : i32
    scf.if %2 {
      %cst_16 = arith.constant 0.000000e+00 : f32
      %19 = vector.broadcast %cst_16 : f32 to vector<8x128xf32>
      %c0_17 = arith.constant 0 : index
      %c0_18 = arith.constant 0 : index
      %20 = vector.load %arg8[%c0_17, %c0_18] : memref<8x128xf32, #tpu.memory_space<vmem>>, vector<8x128xf32>
      tpu.vector_store %arg8[%c0_17, %c0_18], %19 {strides = array<i32>} : memref<8x128xf32, #tpu.memory_space<vmem>>, vector<8x128xf32>,
    } else {
    }
    %c0 = arith.constant 0 : index
    %c0_1 = arith.constant 0 : index
    %3 = vector.load %arg2[%c0, %c0_1] : memref<8x32xf32, #tpu.memory_space<vmem>>, vector<8x32xf32>
    %c0_2 = arith.constant 0 : index
    %c0_3 = arith.constant 0 : index
    %4 = vector.load %arg3[%c0_2, %c0_3] : memref<32x128xf32, #tpu.memory_space<vmem>>, vector<32x128xf32>
    %cst = arith.constant dense<0.000000e+00> : vector<8x128xf32>
    %5 = tpu.matmul %3, %4, %cst {dimension_numbers = #tpu.dot_dimension_numbers<[1], [0], [0], [1], [0, 0, 1, 1], [], []>} : vector<8x32xf32>, vector<32x128xf32>, vector<8x128xf32> -> vector<8x128xf32>
    %c0_4 = arith.constant 0 : index
    %c0_5 = arith.constant 0 : index
    %6 = vector.load %arg4[%c0_4, %c0_5] : memref<1x128xf32, #tpu.memory_space<vmem>>, vector<1x128xf32>
    %7 = vector.broadcast %6 : vector<1x128xf32> to vector<8x128xf32>
    %8 = arith.addf %5, %7 : vector<8x128xf32>
    %cst_6 = arith.constant 0.000000e+00 : f32
    %9 = vector.broadcast %cst_6 : f32 to vector<8x128xf32>
    %10 = arith.maximumf %8, %9 : vector<8x128xf32>
    %c0_7 = arith.constant 0 : index
    %c0_8 = arith.constant 0 : index
    %11 = vector.load %arg8[%c0_7, %c0_8] : memref<8x128xf32, #tpu.memory_space<vmem>>, vector<8x128xf32>
    %c0_9 = arith.constant 0 : index
    %c0_10 = arith.constant 0 : index
    %12 = vector.load %arg5[%c0_9, %c0_10] : memref<128x128xf32, #tpu.memory_space<vmem>>, vector<128x128xf32>
    %cst_11 = arith.constant dense<0.000000e+00> : vector<8x128xf32>
    %13 = tpu.matmul %10, %12, %cst_11 {dimension_numbers = #tpu.dot_dimension_numbers<[1], [0], [0], [1], [0, 0, 1, 1], [], []>} : vector<8x128xf32>, vector<128x128xf32>, vector<8x128xf32> -> vector<8x128xf32>
    %14 = arith.addf %11, %13 : vector<8x128xf32>
    %c0_12 = arith.constant 0 : index
    %c0_13 = arith.constant 0 : index
    %15 = vector.load %arg8[%c0_12, %c0_13] : memref<8x128xf32, #tpu.memory_space<vmem>>, vector<8x128xf32>
    tpu.vector_store %arg8[%c0_12, %c0_13], %14 {strides = array<i32>} : memref<8x128xf32, #tpu.memory_space<vmem>>, vector<8x128xf32>,
    %c0_i32_14 = arith.constant 0 : i32
    %16 = arith.cmpi eq, %arg1, %c0_i32_14 : i32
    %17 = arith.extui %16 : i1 to i32
    %c0_i32_15 = arith.constant 0 : i32
    %18 = arith.cmpi ne, %17, %c0_i32_15 : i32
    scf.if %18 {
      %c0_16 = arith.constant 0 : index
      %c0_17 = arith.constant 0 : index
      %19 = vector.load %arg8[%c0_16, %c0_17] : memref<8x128xf32, #tpu.memory_space<vmem>>, vector<8x128xf32>
      %c0_18 = arith.constant 0 : index
      %c0_19 = arith.constant 0 : index
      %20 = vector.load %arg6[%c0_18, %c0_19] : memref<1x128xf32, #tpu.memory_space<vmem>>, vector<1x128xf32>
      %21 = vector.broadcast %20 : vector<1x128xf32> to vector<8x128xf32>
      %22 = arith.addf %19, %21 : vector<8x128xf32>
      %23 = arith.negf %22 : vector<8x128xf32>
      %24 = math.exp %23 : vector<8x128xf32>
      %cst_20 = arith.constant 1.000000e+00 : f32
      %25 = vector.broadcast %cst_20 : f32 to vector<8x128xf32>
      %26 = arith.addf %25, %24 : vector<8x128xf32>
      %27 = arith.divf %25, %26 : vector<8x128xf32>
      %28 = vector.extract_strided_slice %27 {offsets = [0, 0], sizes = [8, 1], strides = [1, 1]} : vector<8x128xf32> to vector<8x1xf32>
      %c0_21 = arith.constant 0 : index
      %c0_22 = arith.constant 0 : index
      %29 = vector.load %arg7[%c0_21, %c0_22] : memref<8x1xf32, #tpu.memory_space<vmem>>, vector<8x1xf32>
      tpu.vector_store %arg7[%c0_21, %c0_22], %28 {strides = array<i32>} : memref<8x1xf32, #tpu.memory_space<vmem>>, vector<8x1xf32>,
    } else {
    }
    return
  }
  func.func @transform_0(%arg0: i32, %arg1: i32) -> (i32, i32) {
    %c0_i32 = arith.constant 0 : i32
    %c0_i32_0 = arith.constant 0 : i32
    return %arg0, %c0_i32 : i32, i32
  }
  func.func @transform_1(%arg0: i32, %arg1: i32) -> (i32, i32) {
    %c0_i32 = arith.constant 0 : i32
    %c0_i32_0 = arith.constant 0 : i32
    return %c0_i32, %arg1 : i32, i32
  }
  func.func @transform_2(%arg0: i32, %arg1: i32) -> (i32, i32) {
    %c0_i32 = arith.constant 0 : i32
    %c0_i32_0 = arith.constant 0 : i32
    return %c0_i32, %arg1 : i32, i32
  }
  func.func @transform_3(%arg0: i32, %arg1: i32) -> (i32, i32) {
    %c0_i32 = arith.constant 0 : i32
    %c0_i32_0 = arith.constant 0 : i32
    return %arg1, %c0_i32 : i32, i32
  }
  func.func @transform_4(%arg0: i32, %arg1: i32) -> (i32, i32) {
    %c0_i32 = arith.constant 0 : i32
    %c0_i32_0 = arith.constant 0 : i32
    %c0_i32_1 = arith.constant 0 : i32
    return %c0_i32, %c0_i32_0 : i32, i32
  }
  func.func @transform_5(%arg0: i32, %arg1: i32) -> (i32, i32) {
    %c0_i32 = arith.constant 0 : i32
    %c0_i32_0 = arith.constant 0 : i32
    return %arg0, %c0_i32 : i32, i32
  }
}

</mosaic_0001>

<llo_original>
// kernel: _mlp_forward_impl.1
$region0: #{_mlp_forward_impl.1}
  #allocation0 [shape = 'u32[]', space=smem, size = 0x4, offset = 0x4, fixed_abs, tag = 'smem constant byte address 0x4 - core index']
  #allocation1 [shape = 'u32[144,128]{1,0:T(1,128)}', space=vmem, size = 0x12000, scoped, tag = 'internal scratch']
  #allocation2 [shape = 'f32[8,128]{1,0:T(8,128)}', space=vmem, size = 0x1000, scoped, tag = 'scratch operand']
  %s0 = inlined_call_operand.hbm [shape: f32[8,32], index: 0, kind: input, shape index: {}]
  %s1 = inlined_call_operand.hbm [shape: f32[32,128], index: 1, kind: input, shape index: {}]
  %s2 = inlined_call_operand.vmem [shape: f32[1,128], index: 2, kind: input, shape index: {}]
  %s3 = inlined_call_operand.hbm [shape: f32[128,128], index: 3, kind: input, shape index: {}]
  %s4 = inlined_call_operand.vmem [shape: f32[1,128], index: 4, kind: input, shape index: {}]
  %s5 = inlined_call_operand.vmem [shape: f32[8,1], index: 5, kind: output, shape index: {}]
  %s6 = sld [smem:[#allocation0]]
  $region50: #{_mlp_forward_impl.1} parent=0
    _
  %s8 = ssub.s32 1, %s6
  %s9 = scalar_select 0, %s8, %s6
  $region1: #{_mlp_forward_impl.1} parent=0
    #allocation3 [shape = 'u8[4096]{0}', space=vmem, size = 0x1000, scoped, tag = 'input window, operand 0, single buffered']
    #allocation4 [shape = 's32[1]{0}', space=sflag, size = 0x4, scoped, tag = 'scoped memory for _mlp_forward_impl.1']
    #allocation5 [shape = 'u8[16384]{0}', space=vmem, size = 0x4000, scoped, tag = 'input window, operand 1, single buffered']
    #allocation6 [shape = 's32[1]{0}', space=sflag, size = 0x4, scoped, tag = 'scoped memory for _mlp_forward_impl.1']
    #allocation7 [shape = 'u8[65536]{0}', space=vmem, size = 0x10000, scoped, tag = 'input window, operand 3, single buffered']
    %10 = vsyncpa [#allocation4], 0
    %11 = vsyncpa [#allocation6], 0
    // Predicated region
    $region2: #{_mlp_forward_impl.1} parent=1 // pred_check
      _
    $region3: #{_mlp_forward_impl.1} parent=1 // pred_check_branch
      %13 = sbr.rel (0) target = $region5
    $region4: #{_mlp_forward_impl.1} parent=1 // pred_region
      %s15 = ssub.s32 128, 128
      %16 = vsyncadd [#allocation4], %s15
      %s18 = sshll.u32 [#allocation3], 4
      %s19 = int_to_ptr.vmem [resolvable:$true] %s18
      %21 = dma.hbm_to_vmem [thread:$0]  %s0, 128, %s19, [#allocation4]
    $region5: #{_mlp_forward_impl.1} parent=1 // pred_fallthru
      _
    // Predicated region
    $region6: #{_mlp_forward_impl.1} parent=1 // pred_check
      _
    $region7: #{_mlp_forward_impl.1} parent=1 // pred_check_branch
      %23 = sbr.rel (0) target = $region9
    $region8: #{_mlp_forward_impl.1} parent=1 // pred_region
      %s25 = ssub.s32 512, 512
      %26 = vsyncadd [#allocation6], %s25
      %s27 = sshll.u32 [#allocation5], 4
      %s28 = int_to_ptr.vmem [resolvable:$true] %s27
      %33 = dma.hbm_to_vmem [thread:$0]  %s1, 512, %s28, [#allocation6], 128, 128, 8
    $region9: #{_mlp_forward_impl.1} parent=1 // pred_fallthru
      _
    // Predicated region
    $region10: #{_mlp_forward_impl.1} parent=1 // pred_check
      _
    $region11: #{_mlp_forward_impl.1} parent=1 // pred_check_branch
      %35 = sbr.rel (0) target = $region13
    $region12: #{_mlp_forward_impl.1} parent=1 // pred_region
      _
    $region13: #{_mlp_forward_impl.1} parent=1 // pred_fallthru
      _
    // Predicated region
    $region14: #{_mlp_forward_impl.1} parent=1 // pred_check
      _
    $region15: #{_mlp_forward_impl.1} parent=1 // pred_check_branch
      %37 = sbr.rel (0) target = $region17
    $region16: #{_mlp_forward_impl.1} parent=1 // pred_region
      %s39 = ssub.s32 2048, 2048
      %40 = vsyncadd [#allocation6], %s39
      %s41 = sshll.u32 [#allocation7], 4
      %s42 = int_to_ptr.vmem [resolvable:$true] %s41
      %47 = dma.hbm_to_vmem [thread:$0]  %s3, 2048, %s42, [#allocation6], 128, 128, 8
    $region17: #{_mlp_forward_impl.1} parent=1 // pred_fallthru
      _
    // Predicated region
    $region18: #{_mlp_forward_impl.1} parent=1 // pred_check
      _
    $region19: #{_mlp_forward_impl.1} parent=1 // pred_check_branch
      %49 = sbr.rel (0) target = $region21
    $region20: #{_mlp_forward_impl.1} parent=1 // pred_region
      _
    $region21: #{_mlp_forward_impl.1} parent=1 // pred_fallthru
      _
    // Predicated region
    $region22: #{_mlp_forward_impl.1} parent=1 // pred_check
      _
    $region23: #{_mlp_forward_impl.1} parent=1 // pred_check_branch
      %51 = sbr.rel (0) target = $region25
    $region24: #{_mlp_forward_impl.1} parent=1 // pred_region
      %52 = dma.done [#allocation4], 128
    $region25: #{_mlp_forward_impl.1} parent=1 // pred_fallthru
      _
    // Predicated region
    $region26: #{_mlp_forward_impl.1} parent=1 // pred_check
      _
    $region27: #{_mlp_forward_impl.1} parent=1 // pred_check_branch
      %54 = sbr.rel (0) target = $region29
    $region28: #{_mlp_forward_impl.1} parent=1 // pred_region
      %55 = dma.done [#allocation6], 512
    $region29: #{_mlp_forward_impl.1} parent=1 // pred_fallthru
      _
    // Predicated region
    $region30: #{_mlp_forward_impl.1} parent=1 // pred_check
      _
    $region31: #{_mlp_forward_impl.1} parent=1 // pred_check_branch
      %57 = sbr.rel (0) target = $region33
    $region32: #{_mlp_forward_impl.1} parent=1 // pred_region
      %58 = dma.done [#allocation6], 2048
    $region33: #{_mlp_forward_impl.1} parent=1 // pred_fallthru
      _
    %p59 = scmp.eq.s32.totalorder 0, 0
    // Predicated region
    $region34: #{_mlp_forward_impl.1} parent=1 // pred_check
      %p60 = pneg %p59
    $region35: #{_mlp_forward_impl.1} parent=1 // pred_check_branch
      %62 = sbr.rel (%p60) target = $region37
    $region36: #{_mlp_forward_impl.1} parent=1 // pred_region
      %63 = vst [vmem:[#allocation2] sm:$0xff] 0.0
    $region37: #{_mlp_forward_impl.1} parent=1 // pred_fallthru
      _
    %v64 = vld [vmem:[#allocation3] sm:$0xff]
    %v65 = vld [vmem:[#allocation5] sm:$0xff]
    %v66 = vld [vmem:[#allocation5 + $0x8] sm:$0xff]
    %v67 = vld [vmem:[#allocation5 + $0x10] sm:$0xff]
    %v68 = vld [vmem:[#allocation5 + $0x18] sm:$0xff]
    %v69 = vld [vmem:[%s2] sm:$0x1]
    %v71 = vlaneseq
    %v72 = vshrl.u32 %v71, 7
    %v73 = vsub.s32 0, %v72
    %v74 = vrot.slane %v69, %v73
    %vm76 = vcmask 261120
    %v78 = vsel %vm76, %v64, 0
    %80 = vmatprep.subr.mxu0 0.0
    %81 = vmatpush1.msra.mxu0 %v65
    %82 = vmatprep.subr.mxu0 0.0
    %83 = vmatpush1.msra.mxu0 %v66
    %84 = vmatprep.subr.mxu0 0.0
    %85 = vmatpush1.msra.mxu0 %v67
    %86 = vmatprep.subr.mxu0 0.0
    %87 = vmatpush1.msra.mxu0 %v68
    %88 = vmatprep.subr.mxu0 0.0
    %89 = vmatpush1.msra.mxu0 0.0
    %90 = vmatprep.subr.mxu0 0.0
    %91 = vmatpush1.msra.mxu0 0.0
    %92 = vmatprep.subr.mxu0 0.0
    %93 = vmatpush1.msra.mxu0 0.0
    %94 = vmatprep.subr.mxu0 0.0
    %95 = vmatpush1.msra.mxu0 0.0
    %96 = vmatprep.subr.mxu0 0.0
    %97 = vmatpush1.msra.mxu0 0.0
    %98 = vmatprep.subr.mxu0 0.0
    %99 = vmatpush1.msra.mxu0 0.0
    %100 = vmatprep.subr.mxu0 0.0
    %101 = vmatpush1.msra.mxu0 0.0
    %102 = vmatprep.subr.mxu0 0.0
    %103 = vmatpush1.msra.mxu0 0.0
    %104 = vmatprep.subr.mxu0 0.0
    %105 = vmatpush1.msra.mxu0 0.0
    %106 = vmatprep.subr.mxu0 0.0
    %107 = vmatpush1.msra.mxu0 0.0
    %108 = vmatprep.subr.mxu0 0.0
    %109 = vmatpush1.msra.mxu0 0.0
    %110 = vmatprep.subr.mxu0 0.0
    %111 = vmatpush1.msra.mxu0 0.0
    %112 = vmatprep.subr.mxu0 0.0
    %113 = vmatpush1.msra.mxu0 0.0
    %114 = vmatprep.subr.mxu0 0.0
    %115 = vmatpush1.msra.mxu0 0.0
    %116 = vmatprep.subr.mxu0 0.0
    %117 = vmatpush1.msra.mxu0 0.0
    %118 = vmatprep.subr.mxu0 0.0
    %119 = vmatpush1.msra.mxu0 0.0
    %120 = vmatprep.subr.mxu0 0.0
    %121 = vmatpush1.msra.mxu0 0.0
    %122 = vmatprep.subr.mxu0 0.0
    %123 = vmatpush1.msra.mxu0 0.0
    %124 = vmatprep.subr.mxu0 0.0
    %125 = vmatpush1.msra.mxu0 0.0
    %126 = vmatprep.subr.mxu0 0.0
    %127 = vmatpush1.msra.mxu0 0.0
    %128 = vmatprep.subr.mxu0 0.0
    %129 = vmatpush1.msra.mxu0 0.0
    %130 = vmatprep.subr.mxu0 0.0
    %131 = vmatpush1.msra.mxu0 0.0
    %132 = vmatprep.subr.mxu0 0.0
    %133 = vmatpush1.msra.mxu0 0.0
    %134 = vmatprep.subr.mxu0 0.0
    %135 = vmatpush1.msra.mxu0 0.0
    %136 = vmatprep.subr.mxu0 0.0
    %137 = vmatpush1.msra.mxu0 0.0
    %138 = vmatprep.subr.mxu0 0.0
    %139 = vmatpush1.msra.mxu0 0.0
    %140 = vmatprep.subr.mxu0 0.0
    %141 = vmatpush1.msra.mxu0 0.0
    %142 = vmatprep.subr.mxu0 0.0
    %143 = vmatpush1.msra.mxu0 0.0
    %144 = vmatprep.mubr.f32.mxu0 0.0
    %145 = vmatmul.mubr.f32.gmra.mrb[0].mxu0 %v78
    %v146 = vpop.f32.mrb[0].mxu0
    %v147 = vadd.f32 %v74, %v146
    %v148 = vpop.f32.mrb[0].mxu0
    %149 = vdwg.mxu0
    %v150 = vmax.f32 %v147, 0.0
    %v151 = vld [vmem:[#allocation2] sm:$0xff]
    %v152 = vld [vmem:[#allocation7] sm:$0xff]
    %v153 = vld [vmem:[#allocation7 + $0x8] sm:$0xff]
    %v154 = vld [vmem:[#allocation7 + $0x10] sm:$0xff]
    %v155 = vld [vmem:[#allocation7 + $0x18] sm:$0xff]
    %v156 = vld [vmem:[#allocation7 + $0x20] sm:$0xff]
    %v157 = vld [vmem:[#allocation7 + $0x28] sm:$0xff]
    %v158 = vld [vmem:[#allocation7 + $0x30] sm:$0xff]
    %v159 = vld [vmem:[#allocation7 + $0x38] sm:$0xff]
    %v160 = vld [vmem:[#allocation7 + $0x40] sm:$0xff]
    %v161 = vld [vmem:[#allocation7 + $0x48] sm:$0xff]
    %v162 = vld [vmem:[#allocation7 + $0x50] sm:$0xff]
    %v163 = vld [vmem:[#allocation7 + $0x58] sm:$0xff]
    %v164 = vld [vmem:[#allocation7 + $0x60] sm:$0xff]
    %v165 = vld [vmem:[#allocation7 + $0x68] sm:$0xff]
    %v166 = vld [vmem:[#allocation7 + $0x70] sm:$0xff]
    %v167 = vld [vmem:[#allocation7 + $0x78] sm:$0xff]
    %168 = vmatprep.subr.mxu0 0.0
    %169 = vmatpush1.msra.mxu0 %v152
    %170 = vmatprep.subr.mxu0 0.0
    %171 = vmatpush1.msra.mxu0 %v153
    %172 = vmatprep.subr.mxu0 0.0
    %173 = vmatpush1.msra.mxu0 %v154
    %174 = vmatprep.subr.mxu0 0.0
    %175 = vmatpush1.msra.mxu0 %v155
    %176 = vmatprep.subr.mxu0 0.0
    %177 = vmatpush1.msra.mxu0 %v156
    %178 = vmatprep.subr.mxu0 0.0
    %179 = vmatpush1.msra.mxu0 %v157
    %180 = vmatprep.subr.mxu0 0.0
    %181 = vmatpush1.msra.mxu0 %v158
    %182 = vmatprep.subr.mxu0 0.0
    %183 = vmatpush1.msra.mxu0 %v159
    %184 = vmatprep.subr.mxu0 0.0
    %185 = vmatpush1.msra.mxu0 %v160
    %186 = vmatprep.subr.mxu0 0.0
    %187 = vmatpush1.msra.mxu0 %v161
    %188 = vmatprep.subr.mxu0 0.0
    %189 = vmatpush1.msra.mxu0 %v162
    %190 = vmatprep.subr.mxu0 0.0
    %191 = vmatpush1.msra.mxu0 %v163
    %192 = vmatprep.subr.mxu0 0.0
    %193 = vmatpush1.msra.mxu0 %v164
    %194 = vmatprep.subr.mxu0 0.0
    %195 = vmatpush1.msra.mxu0 %v165
    %196 = vmatprep.subr.mxu0 0.0
    %197 = vmatpush1.msra.mxu0 %v166
    %198 = vmatprep.subr.mxu0 0.0
    %199 = vmatpush1.msra.mxu0 %v167
    %200 = vmatprep.subr.mxu0 0.0
    %201 = vmatpush1.msra.mxu0 0.0
    %202 = vmatprep.subr.mxu0 0.0
    %203 = vmatpush1.msra.mxu0 0.0
    %204 = vmatprep.subr.mxu0 0.0
    %205 = vmatpush1.msra.mxu0 0.0
    %206 = vmatprep.subr.mxu0 0.0
    %207 = vmatpush1.msra.mxu0 0.0
    %208 = vmatprep.subr.mxu0 0.0
    %209 = vmatpush1.msra.mxu0 0.0
    %210 = vmatprep.subr.mxu0 0.0
    %211 = vmatpush1.msra.mxu0 0.0
    %212 = vmatprep.subr.mxu0 0.0
    %213 = vmatpush1.msra.mxu0 0.0
    %214 = vmatprep.subr.mxu0 0.0
    %215 = vmatpush1.msra.mxu0 0.0
    %216 = vmatprep.subr.mxu0 0.0
    %217 = vmatpush1.msra.mxu0 0.0
    %218 = vmatprep.subr.mxu0 0.0
    %219 = vmatpush1.msra.mxu0 0.0
    %220 = vmatprep.subr.mxu0 0.0
    %221 = vmatpush1.msra.mxu0 0.0
    %222 = vmatprep.subr.mxu0 0.0
    %223 = vmatpush1.msra.mxu0 0.0
    %224 = vmatprep.subr.mxu0 0.0
    %225 = vmatpush1.msra.mxu0 0.0
    %226 = vmatprep.subr.mxu0 0.0
    %227 = vmatpush1.msra.mxu0 0.0
    %228 = vmatprep.subr.mxu0 0.0
    %229 = vmatpush1.msra.mxu0 0.0
    %230 = vmatprep.subr.mxu0 0.0
    %231 = vmatpush1.msra.mxu0 0.0
    %232 = vmatprep.mubr.f32.mxu0 0.0
    %233 = vmatmul.mubr.f32.gmra.mrb[0].mxu0 %v150
    %v234 = vpop.f32.mrb[0].mxu0
    %v235 = vadd.f32 0.0, %v234
    %v236 = vpop.f32.mrb[0].mxu0
    %237 = vdwg.mxu0
    %v238 = vadd.f32 %v151, %v235
    %239 = vst [vmem:[#allocation2] sm:$0xff] %v238
    // Predicated region
    $region38: #{_mlp_forward_impl.1} parent=1 // pred_check
      %p240 = pneg %p59
    $region39: #{_mlp_forward_impl.1} parent=1 // pred_check_branch
      %242 = sbr.rel (%p240) target = $region41
    $region40: #{_mlp_forward_impl.1} parent=1 // pred_region
      %v243 = vld [vmem:[#allocation2] sm:$0xff]
      %v244 = vld [vmem:[%s4] sm:$0x1]
      %v246 = vlaneseq
      %v247 = vshrl.u32 %v246, 7
      %v248 = vsub.s32 0, %v247
      %v249 = vrot.slane %v244, %v248
      %v251 = vadd.f32 %v243, %v249
      %v252 = vxor.u32 %v251, 2147483648
      %v253 = vmul.f32 %v252, 1.442695
      %v254 = vpow.pop %v253
      %v255 = vadd.f32 %v254, 1.0
      %v256 = vrcp.pop %v255
      %v257 = vmul.f32 1.0, %v256
      %vm258 = vcmask 7168
      %259 = vst.msk [vmem:[%s5] sm:$0xff] %vm258, %v257
    $region41: #{_mlp_forward_impl.1} parent=1 // pred_fallthru
      _
    // Predicated region
    $region42: #{_mlp_forward_impl.1} parent=1 // pred_check
      _
    $region43: #{_mlp_forward_impl.1} parent=1 // pred_check_branch
      %261 = sbr.rel (0) target = $region45
    $region44: #{_mlp_forward_impl.1} parent=1 // pred_region
      _
    $region45: #{_mlp_forward_impl.1} parent=1 // pred_fallthru
      _
    // Predicated region
    $region46: #{_mlp_forward_impl.1} parent=1 // pred_check
      _
    $region47: #{_mlp_forward_impl.1} parent=1 // pred_check_branch
      %263 = sbr.rel (0) target = $region49
    $region48: #{_mlp_forward_impl.1} parent=1 // pred_region
      _
    $region49: #{_mlp_forward_impl.1} parent=1 // pred_fallthru
      _
    %264 = vsyncpa [#allocation4], 1
    %265 = vsyncpa [#allocation6], 1

</llo_original>
